<compile_context>
chip_gen: v6e
topology: v6e:2x2x1
jax: 0.10.0
libtpu: 0.0.40
codegen_flags: <defaults>
</compile_context>

<pallas_src>
import functools

import numpy as np
import jax
import jax.numpy as jnp
from jax.experimental import pallas as pl
from jax.experimental.pallas import tpu as pltpu


# ----------------------------------------------------------------------------
# Small config consistent with VideoMAEv2Base (full model: H=W=224, T=16,
# PH=PW=16, PT=2, E=768, DEPTH=12, HEADS=12).
# ----------------------------------------------------------------------------
class Cfg:
    B = 2
    C, T, H, W = 3, 4, 16, 16
    PT, PH, PW = 2, 8, 8
    NT, NH, NW = T // PT, H // PH, W // PW
    N = NT * NH * NW                   # 8 tokens
    E = 32                             # embed dim
    DEPTH = 2
    HEADS = 4
    HEAD_DIM = E // HEADS
    MLP_HIDDEN = 4 * E
    LN_EPS = 1e-5                      # torch.nn.LayerNorm default eps


def _vmem_limit_bytes():
    """Generation-dependent scoped-VMEM budget: ~52 MiB on v7x (64 MiB phys),
    ~100 MiB on v5e/v6e (128 MiB phys).  Falls back conservatively."""
    cap = 64 * 1024 * 1024
    try:
        cap = int(pltpu.get_tpu_info().vmem_capacity_bytes)
    except Exception:
        pass
    return max(32 * 1024 * 1024, min(100 * 1024 * 1024, cap - 12 * 1024 * 1024))


_VMEM_LIMIT = _vmem_limit_bytes()


def _pick_row_tile(n, target=256):
    """Largest divisor of n that is <= target (row/query tile size)."""
    if n <= target:
        return n
    for t in range(target, 0, -1):
        if n % t == 0:
            return t
    return n


# ----------------------------------------------------------------------------
# Pallas kernels
# ----------------------------------------------------------------------------
def _layer_norm(x, w, b, eps):
    mu = jnp.mean(x, axis=-1, keepdims=True)
    var = jnp.mean(jnp.square(x - mu), axis=-1, keepdims=True)
    return (x - mu) * jax.lax.rsqrt(var + eps) * w + b


def patch_embed_kernel(p_ref, w_ref, b_ref, pos_ref, o_ref):
    # p_ref: (1, TN, K) bf16 tubelets   w_ref: (K, E) bf16
    # b_ref: (1, E) f32   pos_ref: (TN, E) f32   o_ref: (1, TN, E) bf16
    tok = jnp.dot(p_ref[0], w_ref[...], preferred_element_type=jnp.float32)
    o_ref[0] = (tok + b_ref[0] + pos_ref[...]).astype(o_ref.dtype)


def encoder_kernel(x_ref,
                   ln1w_ref, ln1b_ref,
                   qw_ref, qb_ref, kw_ref, vw_ref, vb_ref,
                   projw_ref, projb_ref,
                   ln2w_ref, ln2b_ref,
                   fc1w_ref, fc1b_ref, fc2w_ref, fc2b_ref,
                   fnw_ref, fnb_ref,
                   o_ref,
                   x_scr, q_scr, k_scr, v_scr, attn_scr,
                   *, num_heads, head_dim, eps, row_tile):
    """One grid step = (batch b, block d).  Residual stream lives in x_scr
    across the (innermost, 'arbitrary') depth axis -- do NOT reorder the grid."""
    d = pl.program_id(1)
    n_depth = pl.num_programs(1)
    n_tok = x_scr.shape[0]
    n_row_tiles = n_tok // row_tile

    # Load the patch-embedded tokens (bf16) into the resident f32 activation.
    @pl.when(d == 0)
    def _():
        x_scr[...] = x_ref[0].astype(jnp.float32)

    # --- phase 1: LN1 + q/k/v projections, row tiled, bf16 scratch outputs ---
    # (scale is pre-folded into q_w / q_b; k-bias is fixed zero in VideoMAE)
    def qkv_row(qi, carry):
        r0 = pl.multiple_of(qi * row_tile, row_tile)
        rows = pl.ds(r0, row_tile)
        h = _layer_norm(x_scr[rows, :], ln1w_ref[0], ln1b_ref[0],
                        eps).astype(jnp.bfloat16)
        q = jnp.dot(h, qw_ref[0], preferred_element_type=jnp.float32) + qb_ref[0]
        k = jnp.dot(h, kw_ref[0], preferred_element_type=jnp.float32)
        v = jnp.dot(h, vw_ref[0], preferred_element_type=jnp.float32) + vb_ref[0]
        q_scr[rows, :] = q.astype(jnp.bfloat16)
        k_scr[rows, :] = k.astype(jnp.bfloat16)
        v_scr[rows, :] = v.astype(jnp.bfloat16)
        return carry

    jax.lax.fori_loop(0, n_row_tiles, qkv_row, 0)

    # --- phase 2: per-head attention, query-row tiled; scores stay [tq, N] ---
    def attn_row(qi, carry):
        r0 = pl.multiple_of(qi * row_tile, row_tile)
        rows = pl.ds(r0, row_tile)
        for hi in range(num_heads):          # small static loop; static col slices
            c0 = hi * head_dim
            cols = pl.ds(c0, head_dim)
            qh = q_scr[rows, cols]
            kh = k_scr[:, cols]
            vh = v_scr[:, cols]
            s = jax.lax.dot_general(qh, kh, (((1,), (1,)), ((), ())),
                                    preferred_element_type=jnp.float32)   # [tq,N]
            s = s - jnp.max(s, axis=-1, keepdims=True)
            p = jnp.exp(s)
            p = p * pl.reciprocal(jnp.sum(p, axis=-1, keepdims=True), approx=True)
            o = jnp.dot(p.astype(jnp.bfloat16), vh,
                        preferred_element_type=jnp.float32)               # [tq,D]
            attn_scr[rows, cols] = o.astype(attn_scr.dtype)
        return carry

    jax.lax.fori_loop(0, n_row_tiles, attn_row, 0)

    # --- phase 3: out-proj + residual + LN2 + MLP + residual, row tiled ------
    def mlp_row(qi, carry):
        r0 = pl.multiple_of(qi * row_tile, row_tile)
        rows = pl.ds(r0, row_tile)
        xr = x_scr[rows, :]
        ar = jnp.dot(attn_scr[rows, :], projw_ref[0],
                     preferred_element_type=jnp.float32) + projb_ref[0]
        xr = xr + ar
        h2 = _layer_norm(xr, ln2w_ref[0], ln2b_ref[0], eps).astype(jnp.bfloat16)
        m = jnp.dot(h2, fc1w_ref[0], preferred_element_type=jnp.float32) + fc1b_ref[0]
        m = jax.nn.gelu(m, approximate=False)      # torch nn.GELU default (erf)
        m = jnp.dot(m.astype(jnp.bfloat16), fc2w_ref[0],
                    preferred_element_type=jnp.float32) + fc2b_ref[0]
        x_scr[rows, :] = xr + m
        return carry

    jax.lax.fori_loop(0, n_row_tiles, mlp_row, 0)

    # Final encoder LayerNorm fused into the last block step.
    @pl.when(d == n_depth - 1)
    def _():
        o_ref[0] = _layer_norm(x_scr[...], fnw_ref[0], fnb_ref[0],
                               eps).astype(o_ref.dtype)


# ----------------------------------------------------------------------------
# pallas_call wrappers
# ----------------------------------------------------------------------------
def patch_embed(patches, w, b, pos):
    B, N, K = patches.shape
    E = w.shape[1]
    TN = _pick_row_tile(N, 256)
    return pl.pallas_call(
        patch_embed_kernel,
        grid=(B, N // TN),
        in_specs=[
            pl.BlockSpec((1, TN, K), lambda bi, ni: (bi, ni, 0)),
            pl.BlockSpec((K, E), lambda bi, ni: (0, 0)),
            pl.BlockSpec((1, E), lambda bi, ni: (0, 0)),
            pl.BlockSpec((TN, E), lambda bi, ni: (ni, 0)),
        ],
        out_specs=pl.BlockSpec((1, TN, E), lambda bi, ni: (bi, ni, 0)),
        out_shape=jax.ShapeDtypeStruct((B, N, E), jnp.bfloat16),
        compiler_params=pltpu.CompilerParams(
            dimension_semantics=("parallel", "parallel"),
            vmem_limit_bytes=_VMEM_LIMIT),
    )(patches, w, b, pos)


def encoder_blocks(tok, params, cfg):
    """All DEPTH transformer blocks + final LayerNorm in one pallas_call."""
    B, N, E = tok.shape
    row_tile = _pick_row_tile(N, 256)
    assert N % row_tile == 0 and E == cfg.HEADS * cfg.HEAD_DIM
    kern = functools.partial(encoder_kernel, num_heads=cfg.HEADS,
                             head_dim=cfg.HEAD_DIM, eps=cfg.LN_EPS,
                             row_tile=row_tile)

    def depth_spec(shape):                 # weight stacked along leading depth axis
        nd = len(shape) - 1
        return pl.BlockSpec((1,) + tuple(shape[1:]),
                            lambda bi, di, _nd=nd: (di,) + (0,) * _nd)

    def const_spec(shape):                 # same block for every grid step
        nd = len(shape)
        return pl.BlockSpec(tuple(shape), lambda bi, di, _nd=nd: (0,) * _nd)

    weights = [params["ln1_w"], params["ln1_b"],
               params["q_w"], params["q_b"], params["k_w"],
               params["v_w"], params["v_b"],
               params["proj_w"], params["proj_b"],
               params["ln2_w"], params["ln2_b"],
               params["fc1_w"], params["fc1_b"],
               params["fc2_w"], params["fc2_b"]]

    in_specs = ([pl.BlockSpec((1, N, E), lambda bi, di: (bi, 0, 0))]
                + [depth_spec(w.shape) for w in weights]
                + [const_spec(params["final_ln_w"].shape),
                   const_spec(params["final_ln_b"].shape)])

    # NOTE: if still VMEM-tight on v7x at full scale, add
    # pipeline_mode=pl.Buffered(1) to the fc1_w / fc2_w specs (saves ~9 MiB of
    # double-buffering at negligible overlap cost).
    return pl.pallas_call(
        kern,
        grid=(B, cfg.DEPTH),
        in_specs=in_specs,
        out_specs=pl.BlockSpec((1, N, E), lambda bi, di: (bi, 0, 0)),
        out_shape=jax.ShapeDtypeStruct((B, N, E), jnp.float32),
        scratch_shapes=[pltpu.VMEM((N, E), jnp.float32),    # resident residual stream
                        pltpu.VMEM((N, E), jnp.bfloat16),   # q (scale folded in)
                        pltpu.VMEM((N, E), jnp.bfloat16),   # k
                        pltpu.VMEM((N, E), jnp.bfloat16),   # v
                        pltpu.VMEM((N, E), jnp.bfloat16)],  # attention output
        compiler_params=pltpu.CompilerParams(
            dimension_semantics=("parallel", "arbitrary"),
            vmem_limit_bytes=_VMEM_LIMIT),
    )(tok, *weights, params["final_ln_w"], params["final_ln_b"])


# ----------------------------------------------------------------------------
# Parameters (deterministic synthetic init; no checkpoint loading).
# Matmul weights are stored in bf16; LN weights / biases / pos stay f32.
# The attention scale head_dim**-0.5 is folded into q_w / q_b (pure
# re-parameterization; identical math to applying the scale in the kernel).
# ----------------------------------------------------------------------------
def sinusoid_table(n_position, d_hid):
    pos = np.arange(n_position)[:, None].astype(np.float64)
    j = np.arange(d_hid)[None, :]
    angle = pos / np.power(10000.0, 2.0 * (j // 2) / d_hid)
    table = np.zeros((n_position, d_hid), dtype=np.float64)
    table[:, 0::2] = np.sin(angle[:, 0::2])
    table[:, 1::2] = np.cos(angle[:, 1::2])
    return jnp.asarray(table, dtype=jnp.float32)


def init_params(key, cfg):
    K = cfg.C * cfg.PT * cfg.PH * cfg.PW
    D, E, HID = cfg.DEPTH, cfg.E, cfg.MLP_HIDDEN
    scale = cfg.HEAD_DIM ** -0.5

    def nrm(k, shape, s=0.02):
        return (s * jax.random.normal(k, shape)).astype(jnp.float32)

    keys = jax.random.split(key, 13)
    return {
        # Conv3d weight [E, C, PT, PH, PW] flattened to [K, E] (K = C*PT*PH*PW)
        "patch_w": nrm(keys[0], (K, E)).astype(jnp.bfloat16),
        "patch_b": nrm(keys[1], (1, E)),
        "pos": sinusoid_table(cfg.N, E),                    # fixed, non-learnable
        "ln1_w": jnp.ones((D, E), jnp.float32),
        "ln1_b": jnp.zeros((D, E), jnp.float32),
        # VideoMAE attention: qkv Linear split into q/k/v; bias = cat(q_b, 0, v_b)
        "q_w": (nrm(keys[2], (D, E, E)) * scale).astype(jnp.bfloat16),
        "q_b": nrm(keys[3], (D, E)) * scale,
        "k_w": nrm(keys[4], (D, E, E)).astype(jnp.bfloat16),
        "v_w": nrm(keys[5], (D, E, E)).astype(jnp.bfloat16),
        "v_b": nrm(keys[6], (D, E)),
        "proj_w": nrm(keys[7], (D, E, E)).astype(jnp.bfloat16),
        "proj_b": nrm(keys[8], (D, E)),
        "ln2_w": jnp.ones((D, E), jnp.float32),
        "ln2_b": jnp.zeros((D, E), jnp.float32),
        "fc1_w": nrm(keys[9], (D, E, HID)).astype(jnp.bfloat16),
        "fc1_b": nrm(keys[10], (D, HID)),
        "fc2_w": nrm(keys[11], (D, HID, E)).astype(jnp.bfloat16),
        "fc2_b": nrm(keys[12], (D, E)),
        "final_ln_w": jnp.ones((1, E), jnp.float32),
        "final_ln_b": jnp.zeros((1, E), jnp.float32),
    }


# ----------------------------------------------------------------------------
# Forward (Pallas) and a pure-JAX reference for verification
# ----------------------------------------------------------------------------
def extract_tubelets(video, c):
    B = video.shape[0]
    x = video.reshape(B, c.C, c.NT, c.PT, c.NH, c.PH, c.NW, c.PW)
    x = x.transpose(0, 2, 4, 6, 1, 3, 5, 7)   # [B, NT, NH, NW, C, PT, PH, PW]
    return x.reshape(B, c.N, c.C * c.PT * c.PH * c.PW)


def videomae_forward(video, params, c):
    B = video.shape[0]
    assert video.shape[1:] == (c.C, c.T, c.H, c.W)
    # mask = all False => every token kept (x[~mask].reshape(B, -1, E) is identity)
    patches = extract_tubelets(video, c).astype(jnp.bfloat16)         # [B, N, K]
    tok = patch_embed(patches, params["patch_w"], params["patch_b"], params["pos"])
    tok = encoder_blocks(tok, params, c)                              # [B, N, E] f32
    return tok.reshape(B, c.NT, c.NH, c.NW, c.E)


def reference_forward(video, params, c):
    B = video.shape[0]
    f32 = lambda a: a.astype(jnp.float32)
    patches = f32(extract_tubelets(video, c).astype(jnp.bfloat16))
    tok = patches @ f32(params["patch_w"]) + params["patch_b"] + params["pos"]
    tok = tok.astype(jnp.bfloat16).astype(jnp.float32)    # model bf16 handoff

    def ln(v, w, b):
        mu = v.mean(-1, keepdims=True)
        var = ((v - mu) ** 2).mean(-1, keepdims=True)
        return (v - mu) / jnp.sqrt(var + c.LN_EPS) * w + b

    for d in range(c.DEPTH):
        h = ln(tok, params["ln1_w"][d], params["ln1_b"][d])
        q = h @ f32(params["q_w"][d]) + params["q_b"][d]     # scale pre-folded
        k = h @ f32(params["k_w"][d])                         # k-bias fixed to 0
        v = h @ f32(params["v_w"][d]) + params["v_b"][d]
        hds = lambda t: t.reshape(B, c.N, c.HEADS, c.HEAD_DIM).transpose(0, 2, 1, 3)
        q, k, v = hds(q), hds(k), hds(v)
        s = jnp.einsum("bhnd,bhmd->bhnm", q, k)
        p = jax.nn.softmax(s, axis=-1)
        o = jnp.einsum("bhnm,bhmd->bhnd", p, v)
        o = o.transpose(0, 2, 1, 3).reshape(B, c.N, c.E)
        tok = tok + (o @ f32(params["proj_w"][d]) + params["proj_b"][d])
        h2 = ln(tok, params["ln2_w"][d], params["ln2_b"][d])
        m = jax.nn.gelu(h2 @ f32(params["fc1_w"][d]) + params["fc1_b"][d],
                        approximate=False)
        tok = tok + (m @ f32(params["fc2_w"][d]) + params["fc2_b"][d])
    tok = ln(tok, params["final_ln_w"][0], params["final_ln_b"][0])
    return tok.reshape(B, c.NT, c.NH, c.NW, c.E)


# ----------------------------------------------------------------------------
if __name__ == "__main__":
    cfg = Cfg
    key = jax.random.PRNGKey(0)
    kp, kv = jax.random.split(key)
    params = init_params(kp, cfg)
    video = jax.random.normal(kv, (cfg.B, cfg.C, cfg.T, cfg.H, cfg.W), jnp.float32)

    out = videomae_forward(video, params, cfg)
    out = jax.block_until_ready(out)

    assert out.shape == (cfg.B, cfg.NT, cfg.NH, cfg.NW, cfg.E), out.shape
    assert bool(jnp.all(jnp.isfinite(out)))

    ref = reference_forward(video, params, cfg)
    max_err = float(jnp.max(jnp.abs(out - ref)))
    assert max_err < 5e-2, f"kernel/reference mismatch: {max_err}"

    print("KERNEL_OK")
</pallas_src>

<mosaic_0001>
module attributes {stable_mosaic.version = 11 : i64} {
  func.func @patch_embed_kernel(%arg0: i32, %arg1: i32, %arg2: memref<1x8x384xbf16, #tpu.memory_space<vmem>>, %arg3: memref<384x32xbf16, #tpu.memory_space<vmem>>, %arg4: memref<1x32xf32, #tpu.memory_space<vmem>>, %arg5: memref<8x32xf32, #tpu.memory_space<vmem>>, %arg6: memref<1x8x32xbf16, #tpu.memory_space<vmem>>) attributes {dimension_semantics = [#tpu.dimension_semantics<parallel>, #tpu.dimension_semantics<parallel>], iteration_bounds = array<i64: 2, 1>, scalar_prefetch = 0 : i64, scratch_operands = 0 : i64, tpu.core_type = #tpu.core_type<tc>, window_params = [{transform_indices = @transform_0, window_bounds = array<i64: 1, 8, 384>}, {pipeline_mode = #tpu.pipeline_mode<synchronous>, transform_indices = @transform_1, window_bounds = array<i64: 384, 32>}, {pipeline_mode = #tpu.pipeline_mode<synchronous>, transform_indices = @transform_2, window_bounds = array<i64: 1, 32>}, {transform_indices = @transform_3, window_bounds = array<i64: 8, 32>}, {transform_indices = @transform_4, window_bounds = array<i64: 1, 8, 32>}]} {
    %c0 = arith.constant 0 : index
    %c0_0 = arith.constant 0 : index
    %c0_1 = arith.constant 0 : index
    %0 = vector.load %arg2[%c0, %c0_0, %c0_1] : memref<1x8x384xbf16, #tpu.memory_space<vmem>>, vector<1x8x384xbf16>
    %1 = vector.shape_cast %0 : vector<1x8x384xbf16> to vector<8x384xbf16>
    %c0_2 = arith.constant 0 : index
    %c0_3 = arith.constant 0 : index
    %2 = vector.load %arg3[%c0_2, %c0_3] : memref<384x32xbf16, #tpu.memory_space<vmem>>, vector<384x32xbf16>
    %cst = arith.constant dense<0.000000e+00> : vector<8x32xf32>
    %3 = tpu.matmul %1, %2, %cst {dimension_numbers = #tpu.dot_dimension_numbers<[1], [0], [0], [1], [0, 0, 1, 1], [], []>} : vector<8x384xbf16>, vector<384x32xbf16>, vector<8x32xf32> -> vector<8x32xf32>
    %c0_4 = arith.constant 0 : index
    %c0_5 = arith.constant 0 : index
    %4 = vector.load %arg4[%c0_4, %c0_5] : memref<1x32xf32, #tpu.memory_space<vmem>>, vector<1x32xf32>
    %5 = vector.shape_cast %4 : vector<1x32xf32> to vector<32xf32>
    %6 = vector.shape_cast %5 : vector<32xf32> to vector<1x32xf32>
    %7 = vector.broadcast %6 : vector<1x32xf32> to vector<8x32xf32>
    %8 = arith.addf %3, %7 : vector<8x32xf32>
    %c0_6 = arith.constant 0 : index
    %c0_7 = arith.constant 0 : index
    %9 = vector.load %arg5[%c0_6, %c0_7] : memref<8x32xf32, #tpu.memory_space<vmem>>, vector<8x32xf32>
    %10 = arith.addf %8, %9 : vector<8x32xf32>
    %11 = arith.truncf %10 : vector<8x32xf32> to vector<8x32xbf16>
    %c0_8 = arith.constant 0 : index
    %c0_9 = arith.constant 0 : index
    %c0_10 = arith.constant 0 : index
    %12 = vector.load %arg6[%c0_8, %c0_9, %c0_10] : memref<1x8x32xbf16, #tpu.memory_space<vmem>>, vector<1x8x32xbf16>
    %13 = vector.shape_cast %12 : vector<1x8x32xbf16> to vector<8x32xbf16>
    %14 = vector.shape_cast %11 : vector<8x32xbf16> to vector<1x8x32xbf16>
    tpu.vector_store %arg6[%c0_8, %c0_9, %c0_10], %14 {strides = array<i32>} : memref<1x8x32xbf16, #tpu.memory_space<vmem>>, vector<1x8x32xbf16>,
    return
  }
  func.func @transform_0(%arg0: i32, %arg1: i32) -> (i32, i32, i32) {
    %c0_i32 = arith.constant 0 : i32
    %c0_i32_0 = arith.constant 0 : i32
    return %arg0, %arg1, %c0_i32 : i32, i32, i32
  }
  func.func @transform_1(%arg0: i32, %arg1: i32) -> (i32, i32) {
    %c0_i32 = arith.constant 0 : i32
    %c0_i32_0 = arith.constant 0 : i32
    %c0_i32_1 = arith.constant 0 : i32
    return %c0_i32, %c0_i32_0 : i32, i32
  }
  func.func @transform_2(%arg0: i32, %arg1: i32) -> (i32, i32) {
    %c0_i32 = arith.constant 0 : i32
    %c0_i32_0 = arith.constant 0 : i32
    %c0_i32_1 = arith.constant 0 : i32
    return %c0_i32, %c0_i32_0 : i32, i32
  }
  func.func @transform_3(%arg0: i32, %arg1: i32) -> (i32, i32) {
    %c0_i32 = arith.constant 0 : i32
    %c0_i32_0 = arith.constant 0 : i32
    return %arg1, %c0_i32 : i32, i32
  }
  func.func @transform_4(%arg0: i32, %arg1: i32) -> (i32, i32, i32) {
    %c0_i32 = arith.constant 0 : i32
    %c0_i32_0 = arith.constant 0 : i32
    return %arg0, %arg1, %c0_i32 : i32, i32, i32
  }
}

</mosaic_0001>

<llo_original>
// kernel: tpu_custom_call.1
$region0: #{tpu_custom_call.1}
  #allocation0 [shape = 'u32[]', space=smem, size = 0x4, offset = 0x4, fixed_abs, tag = 'smem constant byte address 0x4 - core index']
  #allocation1 [shape = 'u32[144,128]{1,0:T(1,128)}', space=vmem, size = 0x12000, scoped, tag = 'internal scratch']
  %s0 = inlined_call_operand.vmem [shape: bf16[2,8,384], index: 0, kind: input, shape index: {}]
  %s1 = inlined_call_operand.vmem [shape: bf16[384,32], index: 1, kind: input, shape index: {}]
  %s2 = inlined_call_operand.vmem [shape: f32[1,32], index: 2, kind: input, shape index: {}]
  %s3 = inlined_call_operand.vmem [shape: f32[8,32], index: 3, kind: input, shape index: {}]
  %s4 = inlined_call_operand.hbm [shape: bf16[2,8,32], index: 4, kind: output, shape index: {}]
  %s5 = sld [smem:[#allocation0]]
  $region49: #{tpu_custom_call.1} parent=0
    _
  %s7 = ssub.s32 1, %s5
  %s8 = scalar_select 0, %s7, %s5
  $region1: #{tpu_custom_call.1} parent=0
    #allocation2 [shape = 'u8[4096]{0}', space=vmem, size = 0x1000, scoped, tag = 'output window, operand 0']
    #allocation3 [shape = 's32[2]{0}', space=sflag, size = 0x8, scoped, tag = 'scoped memory for tpu_custom_call.1']
    %9 = vsyncpa [#allocation3], 0
    %s10 = scalar_lea.sflag [#allocation3], 1
    %11 = vsyncpa %s10, 0
    loop: start=0, step=1, limit=4
    $region2: #{tpu_custom_call.1} parent=1 // loop_pre_header
      _
    $region3: #{tpu_custom_call.1} parent=1 // loop_header
      %s13 = sphi 0, %s17
      %p14 = scmp.ge.s32.totalorder %s13, 4
      %s20 = sphi 0, %s32
      %s21 = sphi 0, %s28
      %s22 = sphi 0, %s20
      %s23 = sphi 0, %s21
      %s24 = sphi 0, %s22
      %s25 = sphi 0, %s23
      %s37 = sphi 0, %s39
      %s40 = sphi 0, %s37
      %s41 = sphi 0, %s40
      %s57 = sphi 0, %s41
      %s61 = sphi 0, %s61
      %s63 = sphi 0, %s61
      %s64 = sphi 0, %s63
      %s78 = sphi 0, %s64
      %s82 = sphi 0, %s82
      %s84 = sphi 0, %s82
      %s85 = sphi 0, %s84
      %s99 = sphi 0, %s85
      %s105 = sphi 0, %s107
      %s108 = sphi 0, %s105
      %s109 = sphi 0, %s108
      %s125 = sphi 0, %s109
      %s133 = sphi 0, %s135
      %s136 = sphi 0, %s133
      %s137 = sphi 0, %s136
      %s153 = sphi 0, %s137
    $region4: #{tpu_custom_call.1} parent=1 // loop_header_branch
      %16 = sbr.rel (%p14) target = $region8
    $region5: #{tpu_custom_call.1} parent=1 // loop_body
      %s18 = ssub.s32 %s13, 1
      %s19 = ssub.s32 %s13, 2
      %s26 = sadd.s32 1, %s21
      %p27 = scmp.ge.s32.totalorder %s26, 1
      %s28 = scalar_select %p27, 0, %s26
      %s29 = sadd.s32 1, %s20
      %s30 = scalar_select %p27, %s29, %s20
      %p31 = scmp.ge.s32.totalorder %s30, 2
      %s32 = scalar_select %p31, 0, %s30
      %s33 = ssub.s32 %s20, %s32
      %s34 = ssub.s32 %s21, %s28
      %s35 = sor.u32 %s33, %s34
      %p36 = scmp.eq.s32.totalorder %s35, 0
      %s38 = sadd.s32 %s37, 1
      %s39 = scalar_select %p36, %s37, %s38
      %p42 = pneg %p36
      %p43 = scmp.eq.s32.totalorder %s13, 1
      %p44 = por %p42, %p43
      %p45 = scmp.ne.s32.totalorder %s37, %s40
      %p46 = scmp.eq.s32.totalorder %s13, 0
      %p47 = por %p45, %p46
      %p48 = scmp.ne.s32.totalorder %s37, %s40
      %p49 = scmp.eq.s32.totalorder %s18, 1
      %p50 = por %p48, %p49
      %p51 = scmp.ne.s32.totalorder %s40, %s41
      %p52 = scmp.eq.s32.totalorder %s18, 0
      %p53 = por %p51, %p52
      %p54 = scmp.ne.s32.totalorder %s40, %s41
      %p55 = scmp.eq.s32.totalorder %s19, 1
      %p56 = por %p54, %p55
      %p58 = scmp.ne.s32.totalorder %s41, %s57
      %p59 = scmp.eq.s32.totalorder %s19, 0
      %p60 = por %p58, %p59
      %s62 = sadd.s32 %s61, 1
      %p65 = scmp.eq.s32.totalorder %s13, 1
      %p66 = scmp.ne.s32.totalorder %s61, %s63
      %p67 = scmp.eq.s32.totalorder %s13, 0
      %p68 = por %p66, %p67
      %p69 = scmp.ne.s32.totalorder %s61, %s63
      %p70 = scmp.eq.s32.totalorder %s18, 1
      %p71 = por %p69, %p70
      %p72 = scmp.ne.s32.totalorder %s63, %s64
      %p73 = scmp.eq.s32.totalorder %s18, 0
      %p74 = por %p72, %p73
      %p75 = scmp.ne.s32.totalorder %s63, %s64
      %p76 = scmp.eq.s32.totalorder %s19, 1
      %p77 = por %p75, %p76
      %p79 = scmp.ne.s32.totalorder %s64, %s78
      %p80 = scmp.eq.s32.totalorder %s19, 0
      %p81 = por %p79, %p80
      %s83 = sadd.s32 %s82, 1
      %p86 = scmp.eq.s32.totalorder %s13, 1
      %p87 = scmp.ne.s32.totalorder %s82, %s84
      %p88 = scmp.eq.s32.totalorder %s13, 0
      %p89 = por %p87, %p88
      %p90 = scmp.ne.s32.totalorder %s82, %s84
      %p91 = scmp.eq.s32.totalorder %s18, 1
      %p92 = por %p90, %p91
      %p93 = scmp.ne.s32.totalorder %s84, %s85
      %p94 = scmp.eq.s32.totalorder %s18, 0
      %p95 = por %p93, %p94
      %p96 = scmp.ne.s32.totalorder %s84, %s85
      %p97 = scmp.eq.s32.totalorder %s19, 1
      %p98 = por %p96, %p97
      %p100 = scmp.ne.s32.totalorder %s85, %s99
      %p101 = scmp.eq.s32.totalorder %s19, 0
      %p102 = por %p100, %p101
      %s103 = ssub.s32 %s21, %s28
      %p104 = scmp.eq.s32.totalorder %s103, 0
      %s106 = sadd.s32 %s105, 1
      %s107 = scalar_select %p104, %s105, %s106
      %p110 = pneg %p104
      %p111 = scmp.eq.s32.totalorder %s13, 1
      %p112 = por %p110, %p111
      %p113 = scmp.ne.s32.totalorder %s105, %s108
      %p114 = scmp.eq.s32.totalorder %s13, 0
      %p115 = por %p113, %p114
      %p116 = scmp.ne.s32.totalorder %s105, %s108
      %p117 = scmp.eq.s32.totalorder %s18, 1
      %p118 = por %p116, %p117
      %p119 = scmp.ne.s32.totalorder %s108, %s109
      %p120 = scmp.eq.s32.totalorder %s18, 0
      %p121 = por %p119, %p120
      %p122 = scmp.ne.s32.totalorder %s108, %s109
      %p123 = scmp.eq.s32.totalorder %s19, 1
      %p124 = por %p122, %p123
      %p126 = scmp.ne.s32.totalorder %s109, %s125
      %p127 = scmp.eq.s32.totalorder %s19, 0
      %p128 = por %p126, %p127
      %s129 = ssub.s32 %s20, %s32
      %s130 = ssub.s32 %s21, %s28
      %s131 = sor.u32 %s129, %s130
      %p132 = scmp.eq.s32.totalorder %s131, 0
      %s134 = sadd.s32 %s133, 1
      %s135 = scalar_select %p132, %s133, %s134
      %p138 = pneg %p132
      %p139 = scmp.eq.s32.totalorder %s13, 1
      %p140 = por %p138, %p139
      %p141 = scmp.ne.s32.totalorder %s133, %s136
      %p142 = scmp.eq.s32.totalorder %s13, 0
      %p143 = por %p141, %p142
      %p144 = scmp.ne.s32.totalorder %s133, %s136
      %p145 = scmp.eq.s32.totalorder %s18, 1
      %p146 = por %p144, %p145
      %p147 = scmp.ne.s32.totalorder %s136, %s137
      %p148 = scmp.eq.s32.totalorder %s18, 0
      %p149 = por %p147, %p148
      %p150 = scmp.ne.s32.totalorder %s136, %s137
      %p151 = scmp.eq.s32.totalorder %s19, 1
      %p152 = por %p150, %p151
      %p154 = scmp.ne.s32.totalorder %s137, %s153
      %p155 = scmp.eq.s32.totalorder %s19, 0
      %p156 = por %p154, %p155
      %p157 = scmp.le.s32.totalorder 1, %s13
      %p158 = scmp.lt.s32.totalorder %s13, 3
      %p159 = pnand %p157, %p158
      %p160 = pneg %p159
      // Predicated region
      $region9: #{tpu_custom_call.1} parent=5 // pred_check
        _
      $region10: #{tpu_custom_call.1} parent=5 // pred_check_branch
        %162 = sbr.rel (%p159) target = $region12
      $region11: #{tpu_custom_call.1} parent=5 // pred_region
        %s163 = ssub.s32 %s13, 1
        // Predicated region
        $region13: #{tpu_custom_call.1} parent=11 // pred_check
          %p164 = pneg %p74
        $region14: #{tpu_custom_call.1} parent=11 // pred_check_branch
          %166 = sbr.rel (%p164) target = $region16
        $region15: #{tpu_custom_call.1} parent=11 // pred_region
          _
        $region16: #{tpu_custom_call.1} parent=11 // pred_fallthru
          _
        // Predicated region
        $region17: #{tpu_custom_call.1} parent=11 // pred_check
          %p167 = pneg %p95
        $region18: #{tpu_custom_call.1} parent=11 // pred_check_branch
          %169 = sbr.rel (%p167) target = $region20
        $region19: #{tpu_custom_call.1} parent=11 // pred_region
          _
        $region20: #{tpu_custom_call.1} parent=11 // pred_fallthru
          _
        // Predicated region
        $region21: #{tpu_custom_call.1} parent=11 // pred_check
          %p170 = pneg %p121
        $region22: #{tpu_custom_call.1} parent=11 // pred_check_branch
          %172 = sbr.rel (%p170) target = $region24
        $region23: #{tpu_custom_call.1} parent=11 // pred_region
          %p173 = scmp.lt.s32.totalorder %s23, 0
          %s174 = scalar_select %p173, %s23, 0
          %s175 = smul.addr %s174, 8
          %s176 = scalar_lea.vmem %s3, %s175
        $region24: #{tpu_custom_call.1} parent=11 // pred_fallthru
          _
      $region12: #{tpu_custom_call.1} parent=5 // pred_fallthru
        _
      %p177 = scmp.lt.s32.totalorder %s13, 2
      // Predicated region
      $region25: #{tpu_custom_call.1} parent=5 // pred_check
        %p178 = pneg %p177
      $region26: #{tpu_custom_call.1} parent=5 // pred_check_branch
        %180 = sbr.rel (%p178) target = $region28
      $region27: #{tpu_custom_call.1} parent=5 // pred_region
        // Predicated region
        $region29: #{tpu_custom_call.1} parent=27 // pred_check
          %p181 = pneg %p47
        $region30: #{tpu_custom_call.1} parent=27 // pred_check_branch
          %183 = sbr.rel (%p181) target = $region32
        $region31: #{tpu_custom_call.1} parent=27 // pred_region
          %p184 = scmp.lt.s32.totalorder %s20, 1
          %s185 = scalar_select %p184, %s20, 1
          %p186 = scmp.lt.s32.totalorder %s21, 0
          %s187 = scalar_select %p186, %s21, 0
          %s188 = smul.addr %s187, 3
          %s189 = smul.addr %s185, 3
          %s190 = sadd.s32 %s188, %s189
          %s191 = smul.addr %s190, 4
          %s192 = scalar_lea.vmem %s0, %s191
        $region32: #{tpu_custom_call.1} parent=27 // pred_fallthru
          _
      $region28: #{tpu_custom_call.1} parent=5 // pred_fallthru
        _
      %p193 = scmp.le.s32.totalorder 1, %s13
      %p194 = scmp.lt.s32.totalorder %s13, 3
      %p195 = pnand %p193, %p194
      %p196 = pneg %p195
      // Predicated region
      $region33: #{tpu_custom_call.1} parent=5 // pred_check
        _
      $region34: #{tpu_custom_call.1} parent=5 // pred_check_branch
        %198 = sbr.rel (%p195) target = $region36
      $region35: #{tpu_custom_call.1} parent=5 // pred_region
        %s199 = ssub.s32 %s13, 1
        %p200 = scmp.lt.s32.totalorder %s22, 1
        %s201 = scalar_select %p200, %s22, 1
        %p202 = scmp.lt.s32.totalorder %s23, 0
        %s203 = scalar_select %p202, %s23, 0
        %s204 = smul.addr %s203, 3
        %s205 = smul.addr %s201, 3
        %s206 = sadd.s32 %s204, %s205
        %s207 = smul.addr %s206, 4
        %s208 = scalar_lea.vmem %s0, %s207
        %p209 = pneg %p53
        %p210 = pneg %p50
        %p211 = pneg %p74
        %p212 = pneg %p71
        %p213 = pneg %p95
        %p214 = pneg %p92
        %p215 = scmp.lt.s32.totalorder %s23, 0
        %s216 = scalar_select %p215, %s23, 0
        %s217 = smul.addr %s216, 8
        %s218 = scalar_lea.vmem %s3, %s217
        %p219 = pneg %p121
        %p220 = pneg %p118
        %p221 = pneg %p149
        %p222 = pneg %p146
        %s223 = sand.u32 %s136, 1
        %s224 = scalar_lea.sflag [#allocation3], %s223
        %s225 = sand.u32 %s136, 1
        %s226 = smul.addr %s225, 4
        %s227 = scalar_lea.vmem [#allocation2], %s226
        %p228 = scmp.lt.s32.totalorder %s22, 1
        %s229 = scalar_select %p228, %s22, 1
        %p230 = scmp.lt.s32.totalorder %s23, 0
        %s231 = scalar_select %p230, %s23, 0
        %s232 = smul.addr %s231, 3
        %s233 = smul.addr %s229, 3
        %s234 = sadd.s32 %s232, %s233
        %s235 = smul.addr %s234, 4
        %s236 = scalar_lea.vmem %s0, %s235
        %p237 = scmp.lt.s32.totalorder %s23, 0
        %s238 = scalar_select %p237, %s23, 0
        %s239 = smul.addr %s238, 8
        %s240 = scalar_lea.vmem %s3, %s239
        %v242 = vld [vmem:[%s236] sm:$0xff]
        %v243 = vld [vmem:[%s236 + $0x8] sm:$0xf]
        %v244 = vld [vmem:[%s1] sm:$0xf]
        %v245 = vld [vmem:[%s1 + $0x4] sm:$0xf]
        %v246 = vld [vmem:[%s1 + $0x8] sm:$0xf]
        %v247 = vld [vmem:[%s1 + $0xc] sm:$0xf]
        %v248 = vld [vmem:[%s1 + $0x10] sm:$0xf]
        %v249 = vld [vmem:[%s1 + $0x14] sm:$0xf]
        %v250 = vld [vmem:[%s1 + $0x18] sm:$0xf]
        %v251 = vld [vmem:[%s1 + $0x1c] sm:$0xf]
        %v252 = vld [vmem:[%s1 + $0x20] sm:$0xf]
        %v253 = vld [vmem:[%s1 + $0x24] sm:$0xf]
        %v254 = vld [vmem:[%s1 + $0x28] sm:$0xf]
        %v255 = vld [vmem:[%s1 + $0x2c] sm:$0xf]
        %v256 = vld [vmem:[%s1 + $0x30] sm:$0xf]
        %v257 = vld [vmem:[%s1 + $0x34] sm:$0xf]
        %v258 = vld [vmem:[%s1 + $0x38] sm:$0xf]
        %v259 = vld [vmem:[%s1 + $0x3c] sm:$0xf]
        %v260 = vld [vmem:[%s1 + $0x40] sm:$0xf]
        %v261 = vld [vmem:[%s1 + $0x44] sm:$0xf]
        %v262 = vld [vmem:[%s1 + $0x48] sm:$0xf]
        %v263 = vld [vmem:[%s1 + $0x4c] sm:$0xf]
        %v264 = vld [vmem:[%s1 + $0x50] sm:$0xf]
        %v265 = vld [vmem:[%s1 + $0x54] sm:$0xf]
        %v266 = vld [vmem:[%s1 + $0x58] sm:$0xf]
        %v267 = vld [vmem:[%s1 + $0x5c] sm:$0xf]
        %v268 = vld [vmem:[%s1 + $0x60] sm:$0xf]
        %v269 = vld [vmem:[%s1 + $0x64] sm:$0xf]
        %v270 = vld [vmem:[%s1 + $0x68] sm:$0xf]
        %v271 = vld [vmem:[%s1 + $0x6c] sm:$0xf]
        %v272 = vld [vmem:[%s1 + $0x70] sm:$0xf]
        %v273 = vld [vmem:[%s1 + $0x74] sm:$0xf]
        %v274 = vld [vmem:[%s1 + $0x78] sm:$0xf]
        %v275 = vld [vmem:[%s1 + $0x7c] sm:$0xf]
        %v276 = vld [vmem:[%s1 + $0x80] sm:$0xf]
        %v277 = vld [vmem:[%s1 + $0x84] sm:$0xf]
        %v278 = vld [vmem:[%s1 + $0x88] sm:$0xf]
        %v279 = vld [vmem:[%s1 + $0x8c] sm:$0xf]
        %v280 = vld [vmem:[%s1 + $0x90] sm:$0xf]
        %v281 = vld [vmem:[%s1 + $0x94] sm:$0xf]
        %v282 = vld [vmem:[%s1 + $0x98] sm:$0xf]
        %v283 = vld [vmem:[%s1 + $0x9c] sm:$0xf]
        %v284 = vld [vmem:[%s1 + $0xa0] sm:$0xf]
        %v285 = vld [vmem:[%s1 + $0xa4] sm:$0xf]
        %v286 = vld [vmem:[%s1 + $0xa8] sm:$0xf]
        %v287 = vld [vmem:[%s1 + $0xac] sm:$0xf]
        %v288 = vld [vmem:[%s1 + $0xb0] sm:$0xf]
        %v289 = vld [vmem:[%s1 + $0xb4] sm:$0xf]
        %v290 = vld [vmem:[%s1 + $0xb8] sm:$0xf]
        %v291 = vld [vmem:[%s1 + $0xbc] sm:$0xf]
        %v292 = vld [vmem:[%s2] sm:$0x1]
        %v294 = vlaneseq
        %v295 = vshrl.u32 %v294, 7
        %v296 = vsub.s32 0, %v295
        %v297 = vrot.slane %v292, %v296
        %v301 = vunpack.c.l.b16 %v242
        %v302 = vunpack.c.h.b16 %v242
        %v303 = vunpack.c.l.b16 %v243
        %v304 = vpack.c.b16 %v301, %v301
        %v305 = vpack.c.b16 %v302, %v302
        %v306 = vpack.c.b16 %v303, %v303
        %v358 = vunpack.c.l.b16 %v244
        %v359 = vunpack.c.l.b16 %v245
        %v360 = vunpack.c.l.b16 %v246
        %v361 = vunpack.c.l.b16 %v247
        %v362 = vunpack.c.l.b16 %v248
        %v363 = vunpack.c.l.b16 %v249
        %v364 = vunpack.c.l.b16 %v250
        %v365 = vunpack.c.l.b16 %v251
        %v366 = vunpack.c.l.b16 %v252
        %v367 = vunpack.c.l.b16 %v253
        %v368 = vunpack.c.l.b16 %v254
        %v369 = vunpack.c.l.b16 %v255
        %v370 = vunpack.c.l.b16 %v256
        %v371 = vunpack.c.l.b16 %v257
        %v372 = vunpack.c.l.b16 %v258
        %v373 = vunpack.c.l.b16 %v259
        %v374 = vunpack.c.l.b16 %v260
        %v375 = vunpack.c.l.b16 %v261
        %v376 = vunpack.c.l.b16 %v262
        %v377 = vunpack.c.l.b16 %v263
        %v378 = vunpack.c.l.b16 %v264
        %v379 = vunpack.c.l.b16 %v265
        %v380 = vunpack.c.l.b16 %v266
        %v381 = vunpack.c.l.b16 %v267
        %v382 = vunpack.c.l.b16 %v268
        %v383 = vunpack.c.l.b16 %v269
        %v384 = vunpack.c.l.b16 %v270
        %v385 = vunpack.c.l.b16 %v271
        %v386 = vunpack.c.l.b16 %v272
        %v387 = vunpack.c.l.b16 %v273
        %v388 = vunpack.c.l.b16 %v274
        %v389 = vunpack.c.l.b16 %v275
        %v390 = vunpack.c.l.b16 %v276
        %v391 = vunpack.c.l.b16 %v277
        %v392 = vunpack.c.l.b16 %v278
        %v393 = vunpack.c.l.b16 %v279
        %v394 = vunpack.c.l.b16 %v280
        %v395 = vunpack.c.l.b16 %v281
        %v396 = vunpack.c.l.b16 %v282
        %v397 = vunpack.c.l.b16 %v283
        %v398 = vunpack.c.l.b16 %v284
        %v399 = vunpack.c.l.b16 %v285
        %v400 = vunpack.c.l.b16 %v286
        %v401 = vunpack.c.l.b16 %v287
        %v402 = vunpack.c.l.b16 %v288
        %v403 = vunpack.c.l.b16 %v289
        %v404 = vunpack.c.l.b16 %v290
        %v405 = vunpack.c.l.b16 %v291
        %v406 = vpack.c.b16 %v359, %v358
        %v407 = vpack.c.b16 %v361, %v360
        %v408 = vpack.c.b16 %v363, %v362
        %v409 = vpack.c.b16 %v365, %v364
        %v410 = vpack.c.b16 %v367, %v366
        %v411 = vpack.c.b16 %v369, %v368
        %v412 = vpack.c.b16 %v371, %v370
        %v413 = vpack.c.b16 %v373, %v372
        %v414 = vpack.c.b16 %v375, %v374
        %v415 = vpack.c.b16 %v377, %v376
        %v416 = vpack.c.b16 %v379, %v378
        %v417 = vpack.c.b16 %v381, %v380
        %v418 = vpack.c.b16 %v383, %v382
        %v419 = vpack.c.b16 %v385, %v384
        %v420 = vpack.c.b16 %v387, %v386
        %v421 = vpack.c.b16 %v389, %v388
        %v422 = vpack.c.b16 %v391, %v390
        %v423 = vpack.c.b16 %v393, %v392
        %v424 = vpack.c.b16 %v395, %v394
        %v425 = vpack.c.b16 %v397, %v396
        %v426 = vpack.c.b16 %v399, %v398
        %v427 = vpack.c.b16 %v401, %v400
        %v428 = vpack.c.b16 %v403, %v402
        %v429 = vpack.c.b16 %v405, %v404
        %454 = vmatprep.subr.bf16.mxu0 0
        %455 = vmatpush1.bf16.msra.mxu0 %v413
        %456 = vmatprep.subr.bf16.mxu0 0
        %457 = vmatpush1.bf16.msra.mxu0 %v412
        %458 = vmatprep.subr.bf16.mxu0 0
        %459 = vmatpush1.bf16.msra.mxu0 %v411
        %460 = vmatprep.subr.bf16.mxu0 0
        %461 = vmatpush1.bf16.msra.mxu0 %v410
        %462 = vmatprep.subr.bf16.mxu0 0
        %463 = vmatpush1.bf16.msra.mxu0 %v409
        %464 = vmatprep.subr.bf16.mxu0 0
        %465 = vmatpush1.bf16.msra.mxu0 %v408
        %466 = vmatprep.subr.bf16.mxu0 0
        %467 = vmatpush1.bf16.msra.mxu0 %v407
        %468 = vmatprep.subr.bf16.mxu0 0
        %469 = vmatpush1.bf16.msra.mxu0 %v406
        %470 = vmatprep.subr.bf16.mxu0 0
        %471 = vmatpush2.bf16.msra.mxu0 %v421
        %472 = vmatprep.subr.bf16.mxu0 0
        %473 = vmatpush2.bf16.msra.mxu0 %v420
        %474 = vmatprep.subr.bf16.mxu0 0
        %475 = vmatpush2.bf16.msra.mxu0 %v419
        %476 = vmatprep.subr.bf16.mxu0 0
        %477 = vmatpush2.bf16.msra.mxu0 %v418
        %478 = vmatprep.subr.bf16.mxu0 0
        %479 = vmatpush2.bf16.msra.mxu0 %v417
        %480 = vmatprep.subr.bf16.mxu0 0
        %481 = vmatpush2.bf16.msra.mxu0 %v416
        %482 = vmatprep.subr.bf16.mxu0 0
        %483 = vmatpush2.bf16.msra.mxu0 %v415
        %484 = vmatprep.subr.bf16.mxu0 0
        %485 = vmatpush2.bf16.msra.mxu0 %v414
        %486 = vmatprep.mubr.bf16.mxu0 %v305
        %487 = vmatmul.mubr.bf16.gmra.mxu0 %v304
        %v488 = vpop.f32.mrf.mxu0
        %v489 = vadd.f32 %v297, %v488
        %v490 = vpop.f32.mrf.mxu0
        %v491 = vpop.f32.mrf.mxu0
        %v492 = vpop.f32.mrf.mxu0
        %493 = vdwg.mxu0
        %494 = vmatprep.subr.bf16.mxu0 0
        %495 = vmatpush1.bf16.msra.mxu0 %v429
        %496 = vmatprep.subr.bf16.mxu0 0
        %497 = vmatpush1.bf16.msra.mxu0 %v428
        %498 = vmatprep.subr.bf16.mxu0 0
        %499 = vmatpush1.bf16.msra.mxu0 %v427
        %500 = vmatprep.subr.bf16.mxu0 0
        %501 = vmatpush1.bf16.msra.mxu0 %v426
        %502 = vmatprep.subr.bf16.mxu0 0
        %503 = vmatpush1.bf16.msra.mxu0 %v425
        %504 = vmatprep.subr.bf16.mxu0 0
        %505 = vmatpush1.bf16.msra.mxu0 %v424
        %506 = vmatprep.subr.bf16.mxu0 0
        %507 = vmatpush1.bf16.msra.mxu0 %v423
        %508 = vmatprep.subr.bf16.mxu0 0
        %509 = vmatpush1.bf16.msra.mxu0 %v422
        %510 = vmatprep.subr.bf16.mxu0 0
        %511 = vmatpush2.bf16.msra.mxu0 0
        %512 = vmatprep.subr.bf16.mxu0 0
        %513 = vmatpush2.bf16.msra.mxu0 0
        %514 = vmatprep.subr.bf16.mxu0 0
        %515 = vmatpush2.bf16.msra.mxu0 0
        %516 = vmatprep.subr.bf16.mxu0 0
        %517 = vmatpush2.bf16.msra.mxu0 0
        %518 = vmatprep.subr.bf16.mxu0 0
        %519 = vmatpush2.bf16.msra.mxu0 0
        %520 = vmatprep.subr.bf16.mxu0 0
        %521 = vmatpush2.bf16.msra.mxu0 0
        %522 = vmatprep.subr.bf16.mxu0 0
        %523 = vmatpush2.bf16.msra.mxu0 0
        %524 = vmatprep.subr.bf16.mxu0 0
        %525 = vmatpush2.bf16.msra.mxu0 0
        %526 = vmatprep.mubr.bf16.mxu0 0
        %527 = vmatmul.mubr.bf16.gmra.mxu0 %v306
        %v528 = vpop.f32.mrf.mxu0
        %v529 = vadd.f32 %v489, %v528
        %v530 = vpop.f32.mrf.mxu0
        %v531 = vpop.f32.mrf.mxu0
        %v532 = vpop.f32.mrf.mxu0
        %533 = vdwg.mxu0
        %v534 = vld [vmem:[%s240] sm:$0xff]
        %v535 = vadd.f32 %v529, %v534
        %v536 = vpack.c.bf16 %v535, %v535
        %vm537 = vcmask 257024
        %538 = vst.msk [vmem:[%s227] sm:$0xf] %vm537, %v536
        %s539 = sand.u32 %s136, 1
        %s540 = scalar_lea.sflag [#allocation3], %s539
        %s541 = sand.u32 %s136, 1
        %s542 = smul.addr %s541, 4
        %s543 = scalar_lea.vmem [#allocation2], %s542
        // Predicated region
        $region37: #{tpu_custom_call.1} parent=35 // pred_check
          %p544 = pneg %p146
        $region38: #{tpu_custom_call.1} parent=35 // pred_check_branch
          %546 = sbr.rel (%p544) target = $region40
        $region39: #{tpu_custom_call.1} parent=35 // pred_region
          %s548 = ssub.s32 64, 64
          %549 = vsyncadd %s540, %s548
          %s550 = sadd.s32 %s23, %s22
          %s551 = smul.addr %s550, 64
          %s552 = scalar_lea.hbm %s4, %s551
          %s554 = sshll.u32 %s543, 4
          %s555 = int_to_ptr.vmem [resolvable:$true] %s554
          %557 = dma.vmem_to_hbm [thread:$0]  %s555, 64, %s552, %s540
        $region40: #{tpu_custom_call.1} parent=35 // pred_fallthru
          _
      $region36: #{tpu_custom_call.1} parent=5 // pred_fallthru
        _
      %p558 = scmp.le.s32.totalorder 2, %s13
      // Predicated region
      $region41: #{tpu_custom_call.1} parent=5 // pred_check
        %p559 = pneg %p558
      $region42: #{tpu_custom_call.1} parent=5 // pred_check_branch
        %561 = sbr.rel (%p559) target = $region44
      $region43: #{tpu_custom_call.1} parent=5 // pred_region
        %s562 = ssub.s32 %s13, 2
        // Predicated region
        $region45: #{tpu_custom_call.1} parent=43 // pred_check
          %p563 = pneg %p152
        $region46: #{tpu_custom_call.1} parent=43 // pred_check_branch
          %565 = sbr.rel (%p563) target = $region48
        $region47: #{tpu_custom_call.1} parent=43 // pred_region
          %s566 = sand.u32 %s137, 1
          %s567 = scalar_lea.sflag [#allocation3], %s566
          %s568 = sand.u32 %s137, 1
          %s569 = smul.addr %s568, 4
          %s570 = scalar_lea.vmem [#allocation2], %s569
          %571 = dma.done %s567, 64
        $region48: #{tpu_custom_call.1} parent=43 // pred_fallthru
          _
      $region44: #{tpu_custom_call.1} parent=5 // pred_fallthru
        _
    $region6: #{tpu_custom_call.1} parent=1 // loop_footer
      %s17 = sadd.s32 1, %s13
    $region7: #{tpu_custom_call.1} parent=1 // loop_footer_branch
      %12 = sbr.rel target = $region3
    $region8: #{tpu_custom_call.1} parent=1 // loop_exit
      _
    %572 = vsyncpa [#allocation3], 1
    %s573 = scalar_lea.sflag [#allocation3], 1
    %574 = vsyncpa %s573, 1

</llo_original>
